<compile_context>
chip_gen: v7x
topology: tpu7x:2x2x1
jax: 0.10.0
libtpu: 0.0.40
codegen_flags: <defaults>
</compile_context>

<pallas_src>
import functools

import jax
import jax.numpy as jnp
from jax import lax
from jax.experimental import pallas as pl
from jax.experimental.pallas import tpu as pltpu


# ---------------------------------------------------------------------------
# Hardware-aware sizing helpers
# ---------------------------------------------------------------------------

def _vmem_capacity_bytes():
    """Per-core VMEM capacity; conservative 64 MiB (v7x) if the query fails."""
    try:
        cap = int(pltpu.get_tpu_info().vmem_capacity_bytes)
        if cap > 0:
            return cap
    except Exception:
        pass
    return 64 * 1024 * 1024


def _pick_tm(M, multi_tc, vmem_budget, itemsize):
    """Row tile of the gram output.

    * Multi-TensorCore chips (v7x-like): 2-way row split for M >= 256 so both
      TCs participate via the "parallel" grid axis.
    * Single-TC chips: square path (tm = M) whenever the resident f32 gram
      plus a minimal input tile fit the budget (covers M = 512 comfortably).
    """
    if multi_tc and M >= 256 and M % 2 == 0 and (M // 2) % 8 == 0:
        return M // 2
    out_bytes = 2 * M * M * 4                   # (double-buffered) f32 output
    min_in = 2 * M * 128 * itemsize             # smallest pipelined input tile
    if out_bytes + min_in <= vmem_budget:
        return M
    for cand in (256, 128, 64, 32, 16, 8):      # fallback for very large M
        if M % cand == 0:
            return cand
    return M


def _pick_tk(M, tm, K, itemsize, vmem_budget):
    """K tile: largest lane-aligned tile under the budget, capped at 4096 so
    the reduction axis is pipelined (>= a few steps) instead of one mega-block.
    """
    fixed = 2 * tm * M * 4                      # resident f32 output block(s)
    per_tk = 2 * M * itemsize                   # double-buffered (M, tk) input
    avail = max(vmem_budget - fixed, 256 * 1024)
    tk_cap = max(128, avail // per_tk)
    tk_cap = min(tk_cap, 4096)
    if K <= tk_cap:
        return K                                # small K: single full block
    return max(128, (tk_cap // 128) * 128)      # lane-aligned sub-extent tile


# ---------------------------------------------------------------------------
# Kernels
# ---------------------------------------------------------------------------

def _mask_tail(x, k, k_axis, rem, tk):
    """Zero the garbage lanes of the ragged last K block (in-kernel, no pad)."""
    if rem is None:
        return x
    limit = jnp.where(k == pl.num_programs(k_axis) - 1, rem, tk)
    col = lax.broadcasted_iota(jnp.int32, x.shape, x.ndim - 1)
    return jnp.where(col < limit, x, jnp.zeros_like(x))


def _gram_kernel_square(f_ref, g_ref, *, inv_denom, rem, tk):
    """tm == M: one (M, tk) feature block used as both MXU operands."""
    k = pl.program_id(0)

    @pl.when(k == 0)
    def _():
        g_ref[...] = jnp.zeros_like(g_ref)

    f = _mask_tail(f_ref[...], k, 0, rem, tk)
    # NT contraction on the MXU: contract the K (lane) axis of both operands,
    # native (bf16) operand dtype, f32 accumulation into the resident output.
    g_ref[...] += lax.dot_general(
        f, f,
        dimension_numbers=(((1,), (1,)), ((), ())),
        preferred_element_type=jnp.float32,
    )

    @pl.when(k == pl.num_programs(0) - 1)
    def _():
        g_ref[...] = g_ref[...] * inv_denom     # gram_matrix's .div(a*b*c*d)


def _gram_kernel_tiled(f_ref, g_ref, *, inv_denom, rem, tk, tm):
    """Row-tiled path (v7x megacore): single (M, tk) block, lhs rows sliced
    in-kernel from the already-resident block (no second HBM stream)."""
    i = pl.program_id(0)
    k = pl.program_id(1)

    @pl.when(k == 0)
    def _():
        g_ref[...] = jnp.zeros_like(g_ref)

    rhs = _mask_tail(f_ref[...], k, 1, rem, tk)
    row0 = pl.multiple_of(i * tm, 8)            # sublane-aligned row offset
    lhs = _mask_tail(f_ref[pl.ds(row0, tm), :], k, 1, rem, tk)

    g_ref[...] += lax.dot_general(
        lhs, rhs,
        dimension_numbers=(((1,), (1,)), ((), ())),
        preferred_element_type=jnp.float32,
    )

    @pl.when(k == pl.num_programs(1) - 1)
    def _():
        g_ref[...] = g_ref[...] * inv_denom


# ---------------------------------------------------------------------------
# Wrappers
# ---------------------------------------------------------------------------

def _gram(features, denom, tm=None, tk=None):
    """gram = (features @ features.T) / denom via a Pallas TPU kernel."""
    M, K = features.shape
    itemsize = features.dtype.itemsize

    capacity = _vmem_capacity_bytes()
    budget = capacity // 2                      # working-set budget
    multi_tc = capacity <= (64 << 20)           # v7x-like: 2 TCs, 64 MiB VMEM

    if tm is None:
        tm = _pick_tm(M, multi_tc, budget, itemsize)
    assert M % tm == 0, "row tile must divide M"
    assert tm == M or tm % 8 == 0, "sub-extent row tiles must be sublane-aligned"

    if tk is None:
        tk = _pick_tk(M, tm, K, itemsize, budget)
    tk = min(tk, K)
    if tk < K:
        tk = max(128, (tk // 128) * 128)        # sub-extent K tiles: lane-aligned

    n_k = pl.cdiv(K, tk)
    rem = K - (n_k - 1) * tk
    rem = None if rem == tk else rem            # static tail-mask width (or none)

    inv_denom = 1.0 / float(denom)

    if tm == M:
        grid = (n_k,)
        in_specs = [pl.BlockSpec((M, tk), lambda k: (0, k))]
        out_specs = pl.BlockSpec((M, M), lambda k: (0, 0))
        kernel = functools.partial(_gram_kernel_square,
                                   inv_denom=inv_denom, rem=rem, tk=tk)
        dim_sem = ("arbitrary",)
    else:
        grid = (M // tm, n_k)
        in_specs = [pl.BlockSpec((M, tk), lambda i, k: (0, k))]   # single stream
        out_specs = pl.BlockSpec((tm, M), lambda i, k: (i, 0))
        kernel = functools.partial(_gram_kernel_tiled,
                                   inv_denom=inv_denom, rem=rem, tk=tk, tm=tm)
        dim_sem = ("parallel", "arbitrary")

    est_vmem = 2 * M * tk * itemsize + 2 * tm * M * 4
    cp_kwargs = dict(dimension_semantics=dim_sem)
    if est_vmem > (8 << 20):
        cp_kwargs["vmem_limit_bytes"] = int(
            min(capacity - (8 << 20), est_vmem + (16 << 20)))

    return pl.pallas_call(
        kernel,
        out_shape=jax.ShapeDtypeStruct((M, M), jnp.float32),
        grid_spec=pltpu.PrefetchScalarGridSpec(
            num_scalar_prefetch=0,
            grid=grid,
            in_specs=in_specs,
            out_specs=out_specs,
        ),
        compiler_params=pltpu.CompilerParams(**cp_kwargs),
    )(features)


def gram_matrix(x, compute_dtype=jnp.bfloat16, tm=None, tk=None):
    """JAX/Pallas equivalent of the PyTorch gram_matrix.

    The feature matrix is fed to the kernel in `compute_dtype` (bf16 default:
    halves HBM traffic of this bandwidth-bound gram; the MXU is bf16-native).
    Pass compute_dtype=jnp.float32 for strict f32 operand parity.
    """
    a, b, c, d = x.shape
    feats = x.reshape(a * b, c * d)
    if compute_dtype is not None and feats.dtype != compute_dtype:
        feats = feats.astype(compute_dtype)
    return _gram(feats, float(a * b * c * d), tm=tm, tk=tk)


class StyleLoss:
    """JAX/Pallas equivalent of the PyTorch StyleLoss module."""

    def __init__(self, target_feature):
        # One-time target gram via the same gram kernel (no dummy target pass).
        self.target = gram_matrix(target_feature)
        self.loss = None

    def __call__(self, x):
        G = gram_matrix(x)
        # MSE against the stored target: trivial O(M^2) follow-up JAX op,
        # negligible next to the O(M^2 K) gram matmul done in the kernel.
        self.loss = jnp.mean((G - self.target) ** 2)
        return x  # identity pass-through, like the PyTorch module


# ---------------------------------------------------------------------------
# Self-test
# ---------------------------------------------------------------------------

def _gram_ref(x, dtype=jnp.bfloat16):
    """Reference gram with the same numerics class (dtype operands, f32 acc)."""
    a, b, c, d = x.shape
    f = x.reshape(a * b, c * d).astype(dtype)
    g = jnp.dot(f, f.T, preferred_element_type=jnp.float32)
    return g / (a * b * c * d)


if __name__ == "__main__":
    key = jax.random.PRNGKey(0)
    k_tgt, k_x, k_y = jax.random.split(key, 3)

    # NCHW, small shapes: batch=2, channels=4, spatial=16x16 -> M=8, K=256
    target_feature = jax.random.normal(k_tgt, (2, 4, 16, 16), dtype=jnp.float32)
    x = jax.random.normal(k_x, (2, 4, 16, 16), dtype=jnp.float32)

    module = StyleLoss(target_feature)
    out = module(x)
    jax.block_until_ready(out)
    jax.block_until_ready(module.loss)

    G = gram_matrix(x)
    jax.block_until_ready(G)

    G_ref = _gram_ref(x)
    T_ref = _gram_ref(target_feature)
    loss_ref = jnp.mean((G_ref - T_ref) ** 2)

    assert out.shape == x.shape and bool(jnp.allclose(out, x))
    assert bool(jnp.allclose(module.target, T_ref, atol=1e-5, rtol=1e-4))
    assert bool(jnp.allclose(G, G_ref, atol=1e-5, rtol=1e-4))
    assert bool(jnp.allclose(module.loss, loss_ref, atol=1e-6, rtol=1e-3))

    # Loose sanity check against a pure-f32 reference (bf16 operand rounding).
    G_f32 = _gram_ref(x, dtype=jnp.float32)
    assert bool(jnp.allclose(G, G_f32, atol=5e-3, rtol=5e-2))

    # Ragged-K path (in-kernel tail mask, no jnp.pad), square kernel:
    # M=16, K=14*14=196, tk=128 -> grid (2,), last step masks 60 garbage lanes.
    y = jax.random.normal(k_y, (1, 16, 14, 14), dtype=jnp.float32)
    G_sq = gram_matrix(y, tk=128)
    jax.block_until_ready(G_sq)
    assert bool(jnp.allclose(G_sq, _gram_ref(y), atol=1e-5, rtol=1e-4))

    # Row-tiled ("parallel") path with in-kernel lhs slicing + tail mask:
    # tm=8 -> grid (2, 2), single (16, 128) feature stream.
    G_tiled = gram_matrix(y, tm=8, tk=128)
    jax.block_until_ready(G_tiled)
    assert bool(jnp.allclose(G_tiled, _gram_ref(y), atol=1e-5, rtol=1e-4))

    print("KERNEL_OK")
</pallas_src>

<mosaic_0001>
module attributes {stable_mosaic.version = 11 : i64} {
  func.func @_gram_kernel_square(%arg0: i32, %arg1: memref<8x256xbf16, #tpu.memory_space<vmem>>, %arg2: memref<8x8xf32, #tpu.memory_space<vmem>>) attributes {dimension_semantics = [#tpu.dimension_semantics<arbitrary>], iteration_bounds = array<i64: 1>, scalar_prefetch = 0 : i64, scratch_operands = 0 : i64, tpu.core_type = #tpu.core_type<tc>, window_params = [{transform_indices = @transform_0, window_bounds = array<i64: 8, 256>}, {pipeline_mode = #tpu.pipeline_mode<synchronous>, transform_indices = @transform_1, window_bounds = array<i64: 8, 8>}]} {
    %c0_i32 = arith.constant 0 : i32
    %0 = arith.cmpi eq, %arg0, %c0_i32 : i32
    %1 = arith.extui %0 : i1 to i32
    %c0_i32_0 = arith.constant 0 : i32
    %2 = arith.cmpi ne, %1, %c0_i32_0 : i32
    scf.if %2 {
      %cst_8 = arith.constant 0.000000e+00 : f32
      %11 = vector.broadcast %cst_8 : f32 to vector<8x8xf32>
      %c0_9 = arith.constant 0 : index
      %c0_10 = arith.constant 0 : index
      %12 = vector.load %arg2[%c0_9, %c0_10] : memref<8x8xf32, #tpu.memory_space<vmem>>, vector<8x8xf32>
      tpu.vector_store %arg2[%c0_9, %c0_10], %11 {strides = array<i32>} : memref<8x8xf32, #tpu.memory_space<vmem>>, vector<8x8xf32>,
    } else {
    }
    %c0 = arith.constant 0 : index
    %c0_1 = arith.constant 0 : index
    %3 = vector.load %arg1[%c0, %c0_1] : memref<8x256xbf16, #tpu.memory_space<vmem>>, vector<8x256xbf16>
    %c0_2 = arith.constant 0 : index
    %c0_3 = arith.constant 0 : index
    %4 = vector.load %arg2[%c0_2, %c0_3] : memref<8x8xf32, #tpu.memory_space<vmem>>, vector<8x8xf32>
    %cst = arith.constant dense<0.000000e+00> : vector<8x8xf32>
    %5 = tpu.matmul %3, %3, %cst {dimension_numbers = #tpu.dot_dimension_numbers<[1], [1], [0], [0], [0, 0, 1, 0], [], []>} : vector<8x256xbf16>, vector<8x256xbf16>, vector<8x8xf32> -> vector<8x8xf32>
    %6 = arith.addf %4, %5 : vector<8x8xf32>
    %c0_4 = arith.constant 0 : index
    %c0_5 = arith.constant 0 : index
    %7 = vector.load %arg2[%c0_4, %c0_5] : memref<8x8xf32, #tpu.memory_space<vmem>>, vector<8x8xf32>
    tpu.vector_store %arg2[%c0_4, %c0_5], %6 {strides = array<i32>} : memref<8x8xf32, #tpu.memory_space<vmem>>, vector<8x8xf32>,
    %c0_i32_6 = arith.constant 0 : i32
    %8 = arith.cmpi eq, %arg0, %c0_i32_6 : i32
    %9 = arith.extui %8 : i1 to i32
    %c0_i32_7 = arith.constant 0 : i32
    %10 = arith.cmpi ne, %9, %c0_i32_7 : i32
    scf.if %10 {
      %c0_8 = arith.constant 0 : index
      %c0_9 = arith.constant 0 : index
      %11 = vector.load %arg2[%c0_8, %c0_9] : memref<8x8xf32, #tpu.memory_space<vmem>>, vector<8x8xf32>
      %cst_10 = arith.constant 4.8828125E-4 : f32
      %12 = vector.broadcast %cst_10 : f32 to vector<8x8xf32>
      %13 = arith.mulf %11, %12 : vector<8x8xf32>
      %c0_11 = arith.constant 0 : index
      %c0_12 = arith.constant 0 : index
      %14 = vector.load %arg2[%c0_11, %c0_12] : memref<8x8xf32, #tpu.memory_space<vmem>>, vector<8x8xf32>
      tpu.vector_store %arg2[%c0_11, %c0_12], %13 {strides = array<i32>} : memref<8x8xf32, #tpu.memory_space<vmem>>, vector<8x8xf32>,
    } else {
    }
    return
  }
  func.func @transform_0(%arg0: i32) -> (i32, i32) {
    %c0_i32 = arith.constant 0 : i32
    %c0_i32_0 = arith.constant 0 : i32
    return %c0_i32, %arg0 : i32, i32
  }
  func.func @transform_1(%arg0: i32) -> (i32, i32) {
    %c0_i32 = arith.constant 0 : i32
    %c0_i32_0 = arith.constant 0 : i32
    %c0_i32_1 = arith.constant 0 : i32
    return %c0_i32, %c0_i32_0 : i32, i32
  }
}

</mosaic_0001>

<llo_original>
// kernel: tpu_custom_call.1
$region0: #{tpu_custom_call.1}
  #allocation0 [shape = 'u32[]', space=smem, size = 0x4, offset = 0x4, fixed_abs, tag = 'smem constant byte address 0x4 - core index']
  #allocation1 [shape = 'u32[144,128]{1,0:T(1,128)}', space=vmem, size = 0x12000, scoped, tag = 'internal scratch']
  %s0 = inlined_call_operand.hbm [shape: bf16[8,256], index: 0, kind: input, shape index: {}]
  %s1 = inlined_call_operand.hbm [shape: f32[8,8], index: 1, kind: output, shape index: {}]
  %s2 = sld [smem:[#allocation0]]
  $region26: #{tpu_custom_call.1} parent=0
    _
  %s4 = ssub.s32 1, %s2
  %s5 = scalar_select 0, %s4, %s2
  $region1: #{tpu_custom_call.1} parent=0
    #allocation2 [shape = 'u8[4096]{0}', space=vmem, size = 0x1000, scoped, tag = 'input window, operand 0, single buffered']
    #allocation3 [shape = 's32[1]{0}', space=sflag, size = 0x4, scoped, tag = 'scoped memory for tpu_custom_call.1']
    #allocation4 [shape = 's32[1]{0}', space=sflag, size = 0x4, scoped, tag = 'scoped memory for tpu_custom_call.1']
    #allocation5 [shape = 'u8[4096]{0}', space=vmem, size = 0x1000, scoped, tag = 'output window, operand 0, single buffered']
    %6 = vsyncpa [#allocation3], 0
    %7 = vsyncpa [#allocation4], 0
    // Predicated region
    $region2: #{tpu_custom_call.1} parent=1 // pred_check
      _
    $region3: #{tpu_custom_call.1} parent=1 // pred_check_branch
      %9 = sbr.rel (0) target = $region5
    $region4: #{tpu_custom_call.1} parent=1 // pred_region
      %s11 = ssub.s32 128, 128
      %12 = vsyncadd [#allocation3], %s11
      %s14 = sshll.u32 [#allocation2], 4
      %s15 = int_to_ptr.vmem [resolvable:$true] %s14
      %17 = dma.hbm_to_vmem [thread:$0]  %s0, 128, %s15, [#allocation3]
    $region5: #{tpu_custom_call.1} parent=1 // pred_fallthru
      _
    // Predicated region
    $region6: #{tpu_custom_call.1} parent=1 // pred_check
      _
    $region7: #{tpu_custom_call.1} parent=1 // pred_check_branch
      %19 = sbr.rel (0) target = $region9
    $region8: #{tpu_custom_call.1} parent=1 // pred_region
      %20 = dma.done [#allocation3], 128
    $region9: #{tpu_custom_call.1} parent=1 // pred_fallthru
      _
    %p22 = scmp.eq.s32.totalorder 0, 0
    // Predicated region
    $region10: #{tpu_custom_call.1} parent=1 // pred_check
      %p23 = pneg %p22
    $region11: #{tpu_custom_call.1} parent=1 // pred_check_branch
      %25 = sbr.rel (%p23) target = $region13
    $region12: #{tpu_custom_call.1} parent=1 // pred_region
      %vm26 = vcmask 64512
      %27 = vst.msk [vmem:[#allocation5] sm:$0xff] %vm26, 0.0
    $region13: #{tpu_custom_call.1} parent=1 // pred_fallthru
      _
    %v28 = vld [vmem:[#allocation2] sm:$0xff]
    %v29 = vld [vmem:[#allocation5] sm:$0xff]
    %v31 = vunpack.c.l.b16 %v28
    %v32 = vunpack.c.h.b16 %v28
    %v33 = vpack.c.b16 %v31, %v31
    %v34 = vpack.c.b16 %v32, %v32
    %37 = vmatprep.subr.bf16.mxu0 %v34
    %38 = vmatpush1.bf16.xpose.msra.mxu0 %v33
    %39 = vmatprep.subr.bf16.mxu0 0
    %40 = vmatpush1.bf16.xpose.msra.mxu0 0
    %41 = vmatprep.subr.bf16.mxu0 0
    %42 = vmatpush1.bf16.xpose.msra.mxu0 0
    %43 = vmatprep.subr.bf16.mxu0 0
    %44 = vmatpush1.bf16.xpose.msra.mxu0 0
    %45 = vmatprep.subr.bf16.mxu0 0
    %46 = vmatpush1.bf16.xpose.msra.mxu0 0
    %47 = vmatprep.subr.bf16.mxu0 0
    %48 = vmatpush1.bf16.xpose.msra.mxu0 0
    %49 = vmatprep.subr.bf16.mxu0 0
    %50 = vmatpush1.bf16.xpose.msra.mxu0 0
    %51 = vmatprep.subr.bf16.mxu0 0
    %52 = vmatpush1.bf16.xpose.msra.mxu0 0
    %53 = vmatprep.subr.bf16.mxu0 0
    %54 = vmatpush1.bf16.xpose.msra.mxu0 0
    %55 = vmatprep.subr.bf16.mxu0 0
    %56 = vmatpush1.bf16.xpose.msra.mxu0 0
    %57 = vmatprep.subr.bf16.mxu0 0
    %58 = vmatpush1.bf16.xpose.msra.mxu0 0
    %59 = vmatprep.subr.bf16.mxu0 0
    %60 = vmatpush1.bf16.xpose.msra.mxu0 0
    %61 = vmatprep.subr.bf16.mxu0 0
    %62 = vmatpush1.bf16.xpose.msra.mxu0 0
    %63 = vmatprep.subr.bf16.mxu0 0
    %64 = vmatpush1.bf16.xpose.msra.mxu0 0
    %65 = vmatprep.subr.bf16.mxu0 0
    %66 = vmatpush1.bf16.xpose.msra.mxu0 0
    %67 = vmatprep.subr.bf16.mxu0 0
    %68 = vmatpush1.bf16.xpose.msra.mxu0 0
    %69 = vmatprep.mubr.bf16.mxu0 %v34
    %70 = vmatmul.mubr.bf16.gmra.mrb[0].mxu0 %v33
    %v71 = vpop.f32.mrb[0].mxu0
    %v72 = vadd.f32 0.0, %v71
    %v73 = vpop.f32.mrb[0].mxu0
    %v74 = vpop.f32.mrb[0].mxu0
    %v75 = vpop.f32.mrb[0].mxu0
    %76 = vdwg.mxu0
    %v77 = vadd.f32 %v29, %v72
    %vm78 = vcmask 64512
    %79 = vst.msk [vmem:[#allocation5] sm:$0xff] %vm78, %v77
    // Predicated region
    $region14: #{tpu_custom_call.1} parent=1 // pred_check
      %p80 = pneg %p22
    $region15: #{tpu_custom_call.1} parent=1 // pred_check_branch
      %82 = sbr.rel (%p80) target = $region17
    $region16: #{tpu_custom_call.1} parent=1 // pred_region
      %v83 = vld [vmem:[#allocation5] sm:$0xff]
      %v84 = vmul.f32 %v83, 0.00048828125
      %85 = vst.msk [vmem:[#allocation5] sm:$0xff] %vm78, %v84
    $region17: #{tpu_custom_call.1} parent=1 // pred_fallthru
      _
    // Predicated region
    $region18: #{tpu_custom_call.1} parent=1 // pred_check
      _
    $region19: #{tpu_custom_call.1} parent=1 // pred_check_branch
      %87 = sbr.rel (0) target = $region21
    $region20: #{tpu_custom_call.1} parent=1 // pred_region
      %s89 = ssub.s32 128, 128
      %90 = vsyncadd [#allocation4], %s89
      %s92 = sshll.u32 [#allocation5], 4
      %s93 = int_to_ptr.vmem [resolvable:$true] %s92
      %95 = dma.vmem_to_hbm [thread:$0]  %s93, 128, %s1, [#allocation4]
    $region21: #{tpu_custom_call.1} parent=1 // pred_fallthru
      _
    // Predicated region
    $region22: #{tpu_custom_call.1} parent=1 // pred_check
      _
    $region23: #{tpu_custom_call.1} parent=1 // pred_check_branch
      %97 = sbr.rel (0) target = $region25
    $region24: #{tpu_custom_call.1} parent=1 // pred_region
      %98 = dma.done [#allocation4], 128
    $region25: #{tpu_custom_call.1} parent=1 // pred_fallthru
      _
    %99 = vsyncpa [#allocation3], 1
    %100 = vsyncpa [#allocation4], 1

</llo_original>
